<compile_context>
chip_gen: v7x
topology: tpu7x:2x2x1
jax: 0.10.0
libtpu: 0.0.40
codegen_flags: <defaults>
</compile_context>

<pallas_src>
import jax
import jax.numpy as jnp
from jax.experimental import pallas as pl
from jax.experimental.pallas import tpu as pltpu


_EPS = 1e-6
_THRESHOLD = 20.0  # PyTorch nn.Softplus default threshold
_LANE_CANDIDATES = (4096, 2048, 1024, 512, 256, 128)
_MIB = 1024 * 1024


def _round_up(v, m):
    return ((v + m - 1) // m) * m


def _tpu_block_config():
    """(target_block_bytes, vmem_limit_bytes) chosen per TPU generation."""
    try:
        info = pltpu.get_tpu_info()
        vmem = getattr(info, "vmem_capacity_bytes", None)
    except Exception:  # query unavailable (e.g. interpret mode)
        vmem = None
    if vmem is None:
        # Unknown chip: 2 MiB blocks fit every generation's default scoped VMEM.
        return 2 * _MIB, None
    if vmem <= 64 * _MIB:
        # v7x-class: 64 MiB physical VMEM, ~3.2 TB/s HBM -> big blocks.
        return 8 * _MIB, 44 * _MIB
    # 128 MiB-class (v5e / v6e): 4 MiB blocks; explicit limit covers v5e's
    # small (16 MiB) default scoped-VMEM budget.
    return 4 * _MIB, 32 * _MIB


def _softplus_eps_kernel(x_ref, o_ref):
    # Compute in f32 so the +1e-6 epsilon is not lost for low-precision inputs.
    x = x_ref[...].astype(jnp.float32)
    safe_x = jnp.minimum(x, _THRESHOLD)            # avoid exp overflow
    sp = jnp.where(x > _THRESHOLD, x, jnp.log1p(jnp.exp(safe_x)))
    o_ref[...] = (sp + _EPS).astype(o_ref.dtype)


def _softplus_eps_jnp(x):
    """Pure-jnp reference."""
    xf = x.astype(jnp.float32)
    safe = jnp.minimum(xf, _THRESHOLD)
    sp = jnp.where(xf > _THRESHOLD, xf, jnp.log1p(jnp.exp(safe)))
    return (sp + _EPS).astype(x.dtype)


def softplus_plus_epsilon(x):
    """Elementwise softplus(x) + 1e-6 via a Pallas TPU kernel (any shape)."""
    orig_shape = x.shape
    dtype = x.dtype
    n = x.size
    if n == 0:
        return x

    x_flat = jnp.ravel(x)

    # Widest lane-dense last dim that divides n exactly -> no pad, no copies.
    lane = None
    for cand in _LANE_CANDIDATES:
        if n % cand == 0:
            lane = cand
            break

    if lane is None:
        # Size not a multiple of 128 (rare for NN tensors): pad once to the
        # next multiple of 128, single kernel pass, slice the output back.
        pad = (-n) % 128
        out_pad = softplus_plus_epsilon(jnp.pad(x_flat, (0, pad)))
        return out_pad[:n].reshape(orig_shape)

    rows = n // lane
    x2d = x_flat.reshape(rows, lane)

    target_block_bytes, vmem_limit_bytes = _tpu_block_config()
    itemsize = jnp.dtype(dtype).itemsize

    # Rows per block: ~target_block_bytes, sublane dim a multiple of 32 so the
    # same tiling is clean for f32 / bf16 / int8 / fp8.
    rows_per_block = max(32, (target_block_bytes // (lane * itemsize)) // 32 * 32)
    n_steps = pl.cdiv(rows, rows_per_block)
    if rows >= 64:
        # Guarantee >= 2 (even) balanced steps so v7x's two TensorCores both
        # get work under dimension_semantics=("parallel",).
        n_steps = max(n_steps, 2)
        if n_steps % 2:
            n_steps += 1
        n_steps = max(1, min(n_steps, rows // 32))  # keep block_rows >= 32
    # Balanced blocks (no tiny masked remainder), rounded to a 32-row multiple.
    block_rows = min(rows, _round_up(pl.cdiv(rows, n_steps), 32))
    grid = (pl.cdiv(rows, block_rows),)

    compiler_kwargs = dict(dimension_semantics=("parallel",))
    if vmem_limit_bytes is not None:
        compiler_kwargs["vmem_limit_bytes"] = vmem_limit_bytes

    cost = pl.CostEstimate(
        flops=5 * n,                      # min / cmp / select / add / cast
        transcendentals=2 * n,            # exp + log1p
        bytes_accessed=2 * n * itemsize,  # one read + one write of the tensor
    )

    out2d = pl.pallas_call(
        _softplus_eps_kernel,
        out_shape=jax.ShapeDtypeStruct((rows, lane), dtype),
        grid_spec=pltpu.PrefetchScalarGridSpec(
            num_scalar_prefetch=0,
            grid=grid,
            in_specs=[pl.BlockSpec((block_rows, lane), lambda i: (i, 0))],
            out_specs=pl.BlockSpec((block_rows, lane), lambda i: (i, 0)),
        ),
        compiler_params=pltpu.CompilerParams(**compiler_kwargs),
        cost_estimate=cost,
    )(x2d)

    return out2d.reshape(orig_shape)


if __name__ == "__main__":
    key = jax.random.PRNGKey(0)

    # Primary check: NCHW input, batch=2, channels=4, spatial=16x16.
    x = jax.random.normal(key, (2, 4, 16, 16), dtype=jnp.float32) * 10.0
    out = jax.block_until_ready(softplus_plus_epsilon(x))
    ref = _softplus_eps_jnp(x)
    assert out.shape == x.shape and out.dtype == x.dtype
    assert jnp.allclose(out, ref, atol=1e-6, rtol=1e-6), "mismatch vs reference"

    # Secondary check: larger tensor so the grid has multiple (balanced) steps.
    k2 = jax.random.PRNGKey(1)
    x2 = jax.random.normal(k2, (8, 16, 72, 128), dtype=jnp.float32) * 10.0
    out2 = jax.block_until_ready(softplus_plus_epsilon(x2))
    ref2 = _softplus_eps_jnp(x2)
    assert jnp.allclose(out2, ref2, atol=1e-6, rtol=1e-6), "mismatch (large)"

    # Tertiary check: size not a multiple of 128 (pad-once + slice path).
    k3 = jax.random.PRNGKey(2)
    x3 = jax.random.normal(k3, (3, 5, 29), dtype=jnp.float32) * 10.0
    out3 = jax.block_until_ready(softplus_plus_epsilon(x3))
    ref3 = _softplus_eps_jnp(x3)
    assert jnp.allclose(out3, ref3, atol=1e-6, rtol=1e-6), "mismatch (tail)"

    # Quaternary check: bf16 input (epsilon handled in f32 before the cast).
    x4 = jax.random.normal(jax.random.PRNGKey(3), (4, 32, 128),
                           dtype=jnp.bfloat16) * 10.0
    out4 = jax.block_until_ready(softplus_plus_epsilon(x4))
    ref4 = _softplus_eps_jnp(x4)
    assert out4.dtype == jnp.bfloat16
    assert jnp.allclose(out4.astype(jnp.float32), ref4.astype(jnp.float32),
                        atol=2e-2, rtol=2e-2), "mismatch (bf16)"

    print("KERNEL_OK")
</pallas_src>

<mosaic_0001>
module attributes {stable_mosaic.version = 11 : i64} {
  func.func @_softplus_eps_kernel(%arg0: i32, %arg1: memref<1x2048xf32, #tpu.memory_space<vmem>>, %arg2: memref<1x2048xf32, #tpu.memory_space<vmem>>) attributes {dimension_semantics = [#tpu.dimension_semantics<parallel>], iteration_bounds = array<i64: 1>, scalar_prefetch = 0 : i64, scratch_operands = 0 : i64, tpu.core_type = #tpu.core_type<tc>, window_params = [{transform_indices = @transform_0, window_bounds = array<i64: 1, 2048>}, {transform_indices = @transform_1, window_bounds = array<i64: 1, 2048>}]} {
    %c0 = arith.constant 0 : index
    %c0_0 = arith.constant 0 : index
    %0 = vector.load %arg1[%c0, %c0_0] : memref<1x2048xf32, #tpu.memory_space<vmem>>, vector<1x2048xf32>
    %cst = arith.constant 2.000000e+01 : f32
    %1 = vector.broadcast %cst : f32 to vector<1x2048xf32>
    %2 = arith.minimumf %0, %1 : vector<1x2048xf32>
    %cst_1 = arith.constant 2.000000e+01 : f32
    %3 = vector.broadcast %cst_1 : f32 to vector<1x2048xf32>
    %4 = arith.cmpf ogt, %0, %3 : vector<1x2048xf32>
    %5 = math.exp %2 : vector<1x2048xf32>
    %6 = math.log1p %5 : vector<1x2048xf32>
    %7 = arith.select %4, %0, %6 : vector<1x2048xi1>, vector<1x2048xf32>
    %cst_2 = arith.constant 9.99999997E-7 : f32
    %8 = vector.broadcast %cst_2 : f32 to vector<1x2048xf32>
    %9 = arith.addf %7, %8 : vector<1x2048xf32>
    %c0_3 = arith.constant 0 : index
    %c0_4 = arith.constant 0 : index
    %10 = vector.load %arg2[%c0_3, %c0_4] : memref<1x2048xf32, #tpu.memory_space<vmem>>, vector<1x2048xf32>
    tpu.vector_store %arg2[%c0_3, %c0_4], %9 {strides = array<i32>} : memref<1x2048xf32, #tpu.memory_space<vmem>>, vector<1x2048xf32>,
    return
  }
  func.func @transform_0(%arg0: i32) -> (i32, i32) {
    %c0_i32 = arith.constant 0 : i32
    %c0_i32_0 = arith.constant 0 : i32
    return %arg0, %c0_i32 : i32, i32
  }
  func.func @transform_1(%arg0: i32) -> (i32, i32) {
    %c0_i32 = arith.constant 0 : i32
    %c0_i32_0 = arith.constant 0 : i32
    return %arg0, %c0_i32 : i32, i32
  }
}

</mosaic_0001>

<llo_original>
// kernel: tpu_custom_call.1
$region0: #{tpu_custom_call.1}
  #allocation0 [shape = 'u32[]', space=smem, size = 0x4, offset = 0x4, fixed_abs, tag = 'smem constant byte address 0x4 - core index']
  #allocation1 [shape = 'u32[144,128]{1,0:T(1,128)}', space=vmem, size = 0x12000, scoped, tag = 'internal scratch']
  %s0 = inlined_call_operand.hbm [shape: f32[1,2048], index: 0, kind: input, shape index: {}]
  %s1 = inlined_call_operand.hbm [shape: f32[1,2048], index: 1, kind: output, shape index: {}]
  %s2 = sld [smem:[#allocation0]]
  $region18: #{tpu_custom_call.1} parent=0
    _
  %s4 = ssub.s32 1, %s2
  %s5 = scalar_select 0, %s4, %s2
  $region1: #{tpu_custom_call.1} parent=0
    #allocation2 [shape = 'u8[8192]{0}', space=vmem, size = 0x2000, scoped, tag = 'input window, operand 0, single buffered']
    #allocation3 [shape = 's32[1]{0}', space=sflag, size = 0x4, scoped, tag = 'scoped memory for tpu_custom_call.1']
    #allocation4 [shape = 's32[1]{0}', space=sflag, size = 0x4, scoped, tag = 'scoped memory for tpu_custom_call.1']
    #allocation5 [shape = 'u8[8192]{0}', space=vmem, size = 0x2000, scoped, tag = 'output window, operand 0, single buffered']
    %6 = vsyncpa [#allocation3], 0
    %7 = vsyncpa [#allocation4], 0
    // Predicated region
    $region2: #{tpu_custom_call.1} parent=1 // pred_check
      _
    $region3: #{tpu_custom_call.1} parent=1 // pred_check_branch
      %9 = sbr.rel (0) target = $region5
    $region4: #{tpu_custom_call.1} parent=1 // pred_region
      %s11 = ssub.s32 256, 256
      %12 = vsyncadd [#allocation3], %s11
      %s14 = sshll.u32 [#allocation2], 4
      %s15 = int_to_ptr.vmem [resolvable:$true] %s14
      %17 = dma.hbm_to_vmem [thread:$0]  %s0, 256, %s15, [#allocation3]
    $region5: #{tpu_custom_call.1} parent=1 // pred_fallthru
      _
    // Predicated region
    $region6: #{tpu_custom_call.1} parent=1 // pred_check
      _
    $region7: #{tpu_custom_call.1} parent=1 // pred_check_branch
      %19 = sbr.rel (0) target = $region9
    $region8: #{tpu_custom_call.1} parent=1 // pred_region
      %20 = dma.done [#allocation3], 256
    $region9: #{tpu_custom_call.1} parent=1 // pred_fallthru
      _
    %v21 = vld [vmem:[#allocation2] sm:$0xff]
    %v22 = vld [vmem:[#allocation2 + $0x8] sm:$0xff]
    %v23 = vmin.f32 %v21, 20.0
    %v24 = vmin.f32 %v22, 20.0
    %vm25 = vcmp.gt.f32.partialorder %v21, 20.0
    %vm26 = vcmp.gt.f32.partialorder %v22, 20.0
    %v27 = vmul.f32 %v23, 1.442695
    %v28 = vpow.pop %v27
    %v29 = vmul.f32 %v24, 1.442695
    %v30 = vpow.pop %v29
    %v31 = vadd.f32 %v28, 1.0
    %v32 = vlog2.pop %v31
    %v33 = vmul.f32 %v32, 0.6931472
    %v34 = vmul.f32 -0.5, %v28
    %v35 = vadd.f32 %v34, 1.0
    %v36 = vmul.f32 %v35, %v28
    %v37 = vand.u32 2147483647, %v28
    %vm38 = vcmp.lt.f32.partialorder %v37, 0.0004427343
    %v39 = vsel %vm38, %v36, %v33
    %v40 = vadd.f32 %v30, 1.0
    %v41 = vlog2.pop %v40
    %v42 = vmul.f32 %v41, 0.6931472
    %v43 = vmul.f32 -0.5, %v30
    %v44 = vadd.f32 %v43, 1.0
    %v45 = vmul.f32 %v44, %v30
    %v46 = vand.u32 2147483647, %v30
    %vm47 = vcmp.lt.f32.partialorder %v46, 0.0004427343
    %v48 = vsel %vm47, %v45, %v42
    %v49 = vsel %vm25, %v21, %v39
    %v50 = vsel %vm26, %v22, %v48
    %v51 = vadd.f32 %v49, 1e-06
    %v52 = vadd.f32 %v50, 1e-06
    %53 = vst [vmem:[#allocation5] sm:$0xff] %v51
    %54 = vst [vmem:[#allocation5 + $0x8] sm:$0xff] %v52
    // Predicated region
    $region10: #{tpu_custom_call.1} parent=1 // pred_check
      _
    $region11: #{tpu_custom_call.1} parent=1 // pred_check_branch
      %56 = sbr.rel (0) target = $region13
    $region12: #{tpu_custom_call.1} parent=1 // pred_region
      %s58 = ssub.s32 256, 256
      %59 = vsyncadd [#allocation4], %s58
      %s61 = sshll.u32 [#allocation5], 4
      %s62 = int_to_ptr.vmem [resolvable:$true] %s61
      %64 = dma.vmem_to_hbm [thread:$0]  %s62, 256, %s1, [#allocation4]
    $region13: #{tpu_custom_call.1} parent=1 // pred_fallthru
      _
    // Predicated region
    $region14: #{tpu_custom_call.1} parent=1 // pred_check
      _
    $region15: #{tpu_custom_call.1} parent=1 // pred_check_branch
      %66 = sbr.rel (0) target = $region17
    $region16: #{tpu_custom_call.1} parent=1 // pred_region
      %67 = dma.done [#allocation4], 256
    $region17: #{tpu_custom_call.1} parent=1 // pred_fallthru
      _
    %68 = vsyncpa [#allocation3], 1
    %69 = vsyncpa [#allocation4], 1

</llo_original>
